<compile_context>
chip_gen: v6e
topology: v6e:2x2x1
jax: 0.10.0
libtpu: 0.0.40
codegen_flags: <defaults>
</compile_context>

<pallas_src>
import jax
import jax.numpy as jnp
from jax.experimental import pallas as pl
from jax.experimental.pallas import tpu as pltpu


def _linear_kernel(w_ref, b_ref, x_ref, o_ref):
    # w_ref: (3,) f32 in SMEM, b_ref: (1,) f32 in SMEM
    # x_ref: (3, TS, 128) f32 in VMEM  (feature, sublane-rows, lanes)
    # o_ref: (TS, 128)    f32 in VMEM  (sublane/lane-dense output tile)
    y = (
        x_ref[0] * w_ref[0]
        + x_ref[1] * w_ref[1]
        + x_ref[2] * w_ref[2]
        + b_ref[0]
    )
    o_ref[...] = y.astype(o_ref.dtype)


def multivariate_linear_regression(x, w, b, *, target_ts=1024):
    """Pallas forward pass equivalent to nn.Linear(3, 1)(x).

    x: (B, 3) float32, w: (1, 3) float32, b: (1,) float32 -> (B, 1) float32.
    target_ts: sublane rows (of 128 lanes each) per grid step; multiple of 8.
    """
    B, F = x.shape
    assert F == 3
    target_ts = max(8, (target_ts // 8) * 8)  # keep tile a multiple of 8

    # Batch -> (S sublane-rows) x (128 lanes).
    S = pl.cdiv(B, 128)

    if S < 16:
        # Single tile; block equals the full (small) sublane extent.
        ts = S
    else:
        # >= 2 tiles (so both v7x TensorCores get work), tile multiple of 8,
        # capped at target_ts to bound the double-buffered VMEM working set.
        half = -(-S // 2)                 # ceil(S / 2)
        ts = min(target_ts, ((half + 7) // 8) * 8)

    s_pad = ((S + ts - 1) // ts) * ts
    num_tiles = s_pad // ts
    b_pad = s_pad * 128

    # Fused pad -> transpose -> reshape into the feature-major, sublane-dense
    # (3, S_pad, 128) layout (padding lanes are zero; they produce `bias` and
    # are sliced off below).
    x_t = jnp.pad(x, ((0, b_pad - B), (0, 0))).T.reshape(F, s_pad, 128)
    w_flat = w.reshape(F)

    y_t = pl.pallas_call(
        _linear_kernel,
        out_shape=jax.ShapeDtypeStruct((s_pad, 128), x.dtype),
        grid=(num_tiles,),
        in_specs=[
            pl.BlockSpec(memory_space=pltpu.MemorySpace.SMEM),    # w (3,)
            pl.BlockSpec(memory_space=pltpu.MemorySpace.SMEM),    # b (1,)
            pl.BlockSpec((F, ts, 128), lambda i: (0, i, 0)),      # x tile
        ],
        out_specs=pl.BlockSpec((ts, 128), lambda i: (i, 0)),      # dense out
        compiler_params=pltpu.CompilerParams(
            dimension_semantics=("parallel",),
        ),
    )(w_flat, b, x_t)

    # (S_pad, 128) -> (B, 1): required by the module contract (costs one extra
    # read+write of y in HBM; see TODO above).
    return y_t.reshape(b_pad)[:B].reshape(B, 1)


if __name__ == "__main__":
    key = jax.random.PRNGKey(0)
    kx, kw, kb, kx2 = jax.random.split(key, 4)

    # Deterministic parameter init (same shapes as nn.Linear(3, 1)):
    # PyTorch uses U(-1/sqrt(fan_in), 1/sqrt(fan_in)); replicate that bound.
    bound = 1.0 / jnp.sqrt(3.0)
    w = jax.random.uniform(kw, (1, 3), minval=-bound, maxval=bound, dtype=jnp.float32)
    b = jax.random.uniform(kb, (1,), minval=-bound, maxval=bound, dtype=jnp.float32)

    # Small-batch check (single tile, padded to one 128-lane row).
    B1 = 8
    x1 = jax.random.normal(kx, (B1, 3), dtype=jnp.float32)
    y1 = jax.block_until_ready(multivariate_linear_regression(x1, w, b))
    y1_ref = x1 @ w.T + b
    assert y1.shape == (B1, 1)
    assert jnp.allclose(y1, y1_ref, atol=1e-5, rtol=1e-5)

    # Modest multi-tile check (exercises padding + >=2 grid steps).
    B2 = 2053
    x2 = jax.random.normal(kx2, (B2, 3), dtype=jnp.float32)
    y2 = jax.block_until_ready(multivariate_linear_regression(x2, w, b))
    y2_ref = x2 @ w.T + b
    assert y2.shape == (B2, 1)
    assert jnp.allclose(y2, y2_ref, atol=1e-5, rtol=1e-5)

    print("KERNEL_OK")
</pallas_src>

<mosaic_0001>
module attributes {stable_mosaic.version = 11 : i64} {
  func.func @_linear_kernel(%arg0: i32, %arg1: memref<3xf32, #tpu.memory_space<smem>>, %arg2: memref<1xf32, #tpu.memory_space<smem>>, %arg3: memref<3x1x128xf32, #tpu.memory_space<vmem>>, %arg4: memref<1x128xf32, #tpu.memory_space<vmem>>) attributes {dimension_semantics = [#tpu.dimension_semantics<parallel>], iteration_bounds = array<i64: 1>, scalar_prefetch = 0 : i64, scratch_operands = 0 : i64, tpu.core_type = #tpu.core_type<tc>, window_params = [{transform_indices = @transform_0, window_bounds = array<i64: 3>}, {transform_indices = @transform_1, window_bounds = array<i64: 1>}, {transform_indices = @transform_2, window_bounds = array<i64: 3, 1, 128>}, {transform_indices = @transform_3, window_bounds = array<i64: 1, 128>}]} {
    %c0 = arith.constant 0 : index
    %c0_0 = arith.constant 0 : index
    %c0_1 = arith.constant 0 : index
    %0 = vector.load %arg3[%c0, %c0_0, %c0_1] : memref<3x1x128xf32, #tpu.memory_space<vmem>>, vector<1x1x128xf32>
    %1 = vector.shape_cast %0 : vector<1x1x128xf32> to vector<1x128xf32>
    %c0_2 = arith.constant 0 : index
    %2 = memref.load %arg1[%c0_2] : memref<3xf32, #tpu.memory_space<smem>>
    %3 = vector.broadcast %2 : f32 to vector<1x128xf32>
    %4 = arith.mulf %1, %3 : vector<1x128xf32>
    %c1 = arith.constant 1 : index
    %c0_3 = arith.constant 0 : index
    %c0_4 = arith.constant 0 : index
    %5 = vector.load %arg3[%c1, %c0_3, %c0_4] : memref<3x1x128xf32, #tpu.memory_space<vmem>>, vector<1x1x128xf32>
    %6 = vector.shape_cast %5 : vector<1x1x128xf32> to vector<1x128xf32>
    %c1_5 = arith.constant 1 : index
    %7 = memref.load %arg1[%c1_5] : memref<3xf32, #tpu.memory_space<smem>>
    %8 = vector.broadcast %7 : f32 to vector<1x128xf32>
    %9 = arith.mulf %6, %8 : vector<1x128xf32>
    %10 = arith.addf %4, %9 : vector<1x128xf32>
    %c2 = arith.constant 2 : index
    %c0_6 = arith.constant 0 : index
    %c0_7 = arith.constant 0 : index
    %11 = vector.load %arg3[%c2, %c0_6, %c0_7] : memref<3x1x128xf32, #tpu.memory_space<vmem>>, vector<1x1x128xf32>
    %12 = vector.shape_cast %11 : vector<1x1x128xf32> to vector<1x128xf32>
    %c2_8 = arith.constant 2 : index
    %13 = memref.load %arg1[%c2_8] : memref<3xf32, #tpu.memory_space<smem>>
    %14 = vector.broadcast %13 : f32 to vector<1x128xf32>
    %15 = arith.mulf %12, %14 : vector<1x128xf32>
    %16 = arith.addf %10, %15 : vector<1x128xf32>
    %c0_9 = arith.constant 0 : index
    %17 = memref.load %arg2[%c0_9] : memref<1xf32, #tpu.memory_space<smem>>
    %18 = vector.broadcast %17 : f32 to vector<1x128xf32>
    %19 = arith.addf %16, %18 : vector<1x128xf32>
    %c0_10 = arith.constant 0 : index
    %c0_11 = arith.constant 0 : index
    %20 = vector.load %arg4[%c0_10, %c0_11] : memref<1x128xf32, #tpu.memory_space<vmem>>, vector<1x128xf32>
    tpu.vector_store %arg4[%c0_10, %c0_11], %19 {strides = array<i32>} : memref<1x128xf32, #tpu.memory_space<vmem>>, vector<1x128xf32>,
    return
  }
  func.func @transform_0(%arg0: i32) -> i32 {
    %c0_i32 = arith.constant 0 : i32
    %c0_i32_0 = arith.constant 0 : i32
    return %c0_i32 : i32
  }
  func.func @transform_1(%arg0: i32) -> i32 {
    %c0_i32 = arith.constant 0 : i32
    %c0_i32_0 = arith.constant 0 : i32
    return %c0_i32 : i32
  }
  func.func @transform_2(%arg0: i32) -> (i32, i32, i32) {
    %c0_i32 = arith.constant 0 : i32
    %c0_i32_0 = arith.constant 0 : i32
    %c0_i32_1 = arith.constant 0 : i32
    return %c0_i32, %arg0, %c0_i32_0 : i32, i32, i32
  }
  func.func @transform_3(%arg0: i32) -> (i32, i32) {
    %c0_i32 = arith.constant 0 : i32
    %c0_i32_0 = arith.constant 0 : i32
    return %arg0, %c0_i32 : i32, i32
  }
}

</mosaic_0001>

<llo_original>
// kernel: tpu_custom_call.1
$region0: #{tpu_custom_call.1}
  #allocation0 [shape = 'u32[]', space=smem, size = 0x4, offset = 0x4, fixed_abs, tag = 'smem constant byte address 0x4 - core index']
  #allocation1 [shape = 'u32[144,128]{1,0:T(1,128)}', space=vmem, size = 0x12000, scoped, tag = 'internal scratch']
  #allocation2 [shape = 'f32[1]{0:T(128)S(6)}', space=smem, size = 0x200, scoped, tag = 'scoped memory for tpu_custom_call.1']
  %s0 = inlined_call_operand.hbm [shape: f32[3], index: 0, kind: input, shape index: {}]
  %s1 = inlined_call_operand.<no memory space> [shape: f32[1], index: 1, kind: input, shape index: {}]
  %s2 = inlined_call_operand.vmem [shape: f32[3,1,128], index: 2, kind: input, shape index: {}]
  %s3 = inlined_call_operand.hbm [shape: f32[1,128], index: 3, kind: output, shape index: {}]
  %s4 = sld [smem:[#allocation0]]
  $region26: #{tpu_custom_call.1} parent=0
    _
  %s6 = ssub.s32 1, %s4
  %s7 = scalar_select 0, %s6, %s4
  %8 = sst [smem:[#allocation2]] %s1
  $region1: #{tpu_custom_call.1} parent=0
    #allocation3 [shape = 'u8[512]{0}', space=smem, size = 0x200, scoped, tag = 'input window, operand 0, single buffered']
    #allocation4 [shape = 's32[1]{0}', space=sflag, size = 0x4, scoped, tag = 'scoped memory for tpu_custom_call.1']
    #allocation5 [shape = 's32[1]{0}', space=sflag, size = 0x4, scoped, tag = 'scoped memory for tpu_custom_call.1']
    #allocation6 [shape = 'u8[512]{0}', space=vmem, size = 0x400, scoped, tag = 'output window, operand 0, single buffered']
    %9 = vsyncpa [#allocation5], 0
    %10 = vsyncpa [#allocation4], 0
    // Predicated region
    $region2: #{tpu_custom_call.1} parent=1 // pred_check
      _
    $region3: #{tpu_custom_call.1} parent=1 // pred_check_branch
      %12 = sbr.rel (0) target = $region5
    $region4: #{tpu_custom_call.1} parent=1 // pred_region
      %s14 = ssub.s32 16, 16
      %15 = vsyncadd [#allocation5], %s14
      %18 = dma.hbm_to_smem %s0, 16, [#allocation3], [#allocation5]
    $region5: #{tpu_custom_call.1} parent=1 // pred_fallthru
      _
    // Predicated region
    $region6: #{tpu_custom_call.1} parent=1 // pred_check
      _
    $region7: #{tpu_custom_call.1} parent=1 // pred_check_branch
      %20 = sbr.rel (0) target = $region9
    $region8: #{tpu_custom_call.1} parent=1 // pred_region
      _
    $region9: #{tpu_custom_call.1} parent=1 // pred_fallthru
      _
    // Predicated region
    $region10: #{tpu_custom_call.1} parent=1 // pred_check
      _
    $region11: #{tpu_custom_call.1} parent=1 // pred_check_branch
      %22 = sbr.rel (0) target = $region13
    $region12: #{tpu_custom_call.1} parent=1 // pred_region
      _
    $region13: #{tpu_custom_call.1} parent=1 // pred_fallthru
      _
    // Predicated region
    $region14: #{tpu_custom_call.1} parent=1 // pred_check
      _
    $region15: #{tpu_custom_call.1} parent=1 // pred_check_branch
      %24 = sbr.rel (0) target = $region17
    $region16: #{tpu_custom_call.1} parent=1 // pred_region
      %25 = dma.done [#allocation5], 16
    $region17: #{tpu_custom_call.1} parent=1 // pred_fallthru
      _
    %26 = sfence
    %v27 = vld [vmem:[%s2] sm:$0x1]
    %s28 = sld [smem:[#allocation3]]
    %v29 = vstv %s28
    %v30 = vmul.f32 %v27, %v29
    %s31 = scalar_lea.vmem %s2, 1
    %v32 = vld [vmem:[%s31] sm:$0x1]
    %s33 = sld [smem:[#allocation3 + $0x1]]
    %v34 = vstv %s33
    %v35 = vmul.f32 %v32, %v34
    %v36 = vadd.f32 %v30, %v35
    %s37 = scalar_lea.vmem %s2, 2
    %v38 = vld [vmem:[%s37] sm:$0x1]
    %s39 = sld [smem:[#allocation3 + $0x2]]
    %v40 = vstv %s39
    %v41 = vmul.f32 %v38, %v40
    %v42 = vadd.f32 %v36, %v41
    %s43 = sld [smem:[#allocation2]]
    %v44 = vstv %s43
    %v45 = vadd.f32 %v42, %v44
    %46 = vst [vmem:[#allocation6] sm:$0x1] %v45
    // Predicated region
    $region18: #{tpu_custom_call.1} parent=1 // pred_check
      _
    $region19: #{tpu_custom_call.1} parent=1 // pred_check_branch
      %48 = sbr.rel (0) target = $region21
    $region20: #{tpu_custom_call.1} parent=1 // pred_region
      %s50 = ssub.s32 16, 16
      %51 = vsyncadd [#allocation4], %s50
      %s53 = sshll.u32 [#allocation6], 4
      %s54 = int_to_ptr.vmem [resolvable:$true] %s53
      %56 = dma.vmem_to_hbm [thread:$0]  %s54, 16, %s3, [#allocation4]
    $region21: #{tpu_custom_call.1} parent=1 // pred_fallthru
      _
    // Predicated region
    $region22: #{tpu_custom_call.1} parent=1 // pred_check
      _
    $region23: #{tpu_custom_call.1} parent=1 // pred_check_branch
      %58 = sbr.rel (0) target = $region25
    $region24: #{tpu_custom_call.1} parent=1 // pred_region
      %59 = dma.done [#allocation4], 16
    $region25: #{tpu_custom_call.1} parent=1 // pred_fallthru
      _
    %60 = vsyncpa [#allocation4], 1
    %61 = vsyncpa [#allocation5], 1

</llo_original>
